<compile_context>
chip_gen: v7x
topology: tpu7x:2x2x1
jax: 0.10.0
libtpu: 0.0.40
codegen_flags: <defaults>
</compile_context>

<pallas_src>
import math

import jax
import jax.numpy as jnp
from jax.experimental import pallas as pl
from jax.experimental.pallas import tpu as pltpu

RHO = 0.975  # retrieve(config, 'Loss/rho', default=0.975)


def _fused_nll_kernel(s1_ref, s2_ref, c_ref, inv_ref, nll1_ref, nll2_ref,
                      acc1, acc2):
    k = pl.program_id(1)

    @pl.when(k == 0)
    def _():
        acc1[...] = jnp.zeros_like(acc1)
        acc2[...] = jnp.zeros_like(acc2)

    s1 = s1_ref[...].astype(jnp.float32)          # (B, tile_r, 128)
    s2 = s2_ref[...].astype(jnp.float32)          # (B, tile_r, 128)
    c = c_ref[...][:, :, None]                    # (B, 1, 1) = mask * rho

    # Lane-dense partial sums: reduce only over the sublane axis each step.
    acc1[...] += jnp.sum(s1 * s1, axis=1)         # (B, 128)
    diff = s2 - c * s1
    acc2[...] += jnp.sum(diff * diff, axis=1)     # (B, 128)

    @pl.when(k == pl.num_programs(1) - 1)
    def _():
        inv = inv_ref[...]                        # (B, 1) = 1/(1 - mask*rho^2)
        nll1_ref[...] = 0.5 * jnp.sum(acc1[...], axis=1, keepdims=True)
        nll2_ref[...] = (0.5 * jnp.sum(acc2[...], axis=1, keepdims=True)) * inv


def _choose_tile_rows(B, D, itemsize, target_buf_bytes=8 << 20):
    """Pick a sublane tile (rows of 128 lanes) and the padded total row count."""
    r0 = -(-D // 128)                       # ceil(D / 128)
    r0_pad = -(-r0 // 8) * 8                # round rows up to a sublane multiple
    max_rows = max(8, (target_buf_bytes // (B * 128 * itemsize)) // 8 * 8)
    if r0_pad <= max_rows:
        return int(r0_pad), int(r0_pad)     # single grid step over D
    tile_r = int(max_rows)
    total_r = -(-r0 // tile_r) * tile_r
    return tile_r, int(total_r)


def fused_factor_nll(s1_stack, s2_stack, c, inv, *, tile_r):
    """s*_stack: (F, B, R, 128); c, inv: (F, B, 1) float32.

    Returns nll1, nll2 of shape (F, B):
      nll1[f, b] = 0.5 * sum(s1[f, b] ** 2)
      nll2[f, b] = 0.5 * sum((s2[f, b] - c[f, b] * s1[f, b]) ** 2) * inv[f, b]
    """
    F, B, R, L = s1_stack.shape
    assert L == 128 and R % tile_r == 0 and tile_r % 8 == 0
    itemsize = jnp.dtype(s1_stack.dtype).itemsize
    # 2 inputs x 2 pipeline buffers x (B, tile_r, 128) + headroom for
    # outputs/scratch/internal.  Stays <= ~40 MiB with the 8 MiB buffer target.
    vmem_limit = int(4 * B * tile_r * 128 * itemsize) + (8 << 20)

    nll1, nll2 = pl.pallas_call(
        _fused_nll_kernel,
        out_shape=(jax.ShapeDtypeStruct((F, B, 1), jnp.float32),
                   jax.ShapeDtypeStruct((F, B, 1), jnp.float32)),
        grid_spec=pltpu.PrefetchScalarGridSpec(
            num_scalar_prefetch=0,
            grid=(F, R // tile_r),
            in_specs=[
                pl.BlockSpec((None, B, tile_r, 128), lambda f, k: (f, 0, k, 0)),
                pl.BlockSpec((None, B, tile_r, 128), lambda f, k: (f, 0, k, 0)),
                pl.BlockSpec((None, B, 1), lambda f, k: (f, 0, 0)),
                pl.BlockSpec((None, B, 1), lambda f, k: (f, 0, 0)),
            ],
            out_specs=[
                pl.BlockSpec((None, B, 1), lambda f, k: (f, 0, 0)),
                pl.BlockSpec((None, B, 1), lambda f, k: (f, 0, 0)),
            ],
            scratch_shapes=[pltpu.VMEM((B, 128), jnp.float32),
                            pltpu.VMEM((B, 128), jnp.float32)]),
        compiler_params=pltpu.CompilerParams(
            dimension_semantics=("parallel", "arbitrary"),
            vmem_limit_bytes=vmem_limit),
    )(s1_stack, s2_stack, c, inv)
    return nll1[:, :, 0], nll2[:, :, 0]


def factor_loss(samples, logdets, factors, global_step=0, rho=RHO):
    """JAX/Pallas equivalent of FactorLoss.forward."""
    del global_step
    sample1 = samples['example1']
    sample2 = samples['example2']
    logdet1 = logdets['example1']
    logdet2 = logdets['example2']
    assert logdet1.ndim == 1
    assert logdet2.ndim == 1
    assert len(sample1) == len(sample2)

    n_factors = len(sample1)
    B = sample1[0].shape[0]
    dtype = sample1[0].dtype
    itemsize = jnp.dtype(dtype).itemsize

    d_max = max(int(math.prod(x.shape[1:])) for x in sample1)
    tile_r, R = _choose_tile_rows(B, d_max, itemsize)
    d_pad = R * 128

    def prep(x):
        flat = x.reshape(B, -1)                 # native dtype; upcast in-kernel
        d = flat.shape[1]
        if d < d_pad:
            # zero tail contributes 0 to both sum-of-squares terms
            flat = jnp.pad(flat, ((0, 0), (0, d_pad - d)))
        return flat.reshape(B, R, 128)

    s1_stack = jnp.stack([prep(x) for x in sample1], axis=0)   # (F, B, R, 128)
    s2_stack = jnp.stack([prep(x) for x in sample2], axis=0)

    # factor_mask[i] = (factors == i) | ((factors < 0) & (factors != -i))
    idx = jnp.arange(n_factors, dtype=factors.dtype)[:, None]  # (F, 1)
    fb = factors[None, :]                                      # (1, B)
    mask = ((fb == idx) | ((fb < 0) & (fb != -idx))).astype(jnp.float32)
    c = (mask * rho)[:, :, None]                               # (F, B, 1)
    inv = (1.0 / (1.0 - mask * (rho * rho)))[:, :, None]       # (F, B, 1)

    nll1_fb, nll2_fb = fused_factor_nll(s1_stack, s2_stack, c, inv,
                                        tile_r=tile_r)         # (F, B) each

    # nll(concat(sample1, dim=1)) == sum over factors of per-factor nll
    nll_loss1 = jnp.mean(jnp.sum(nll1_fb, axis=0))
    nlogdet_loss1 = -jnp.mean(logdet1)
    loss1 = nll_loss1 + nlogdet_loss1

    nll_loss2 = jnp.sum(jnp.mean(nll2_fb, axis=1))
    nlogdet_loss2 = -jnp.mean(logdet2)
    loss2 = nll_loss2 + nlogdet_loss2

    loss = loss1 + loss2
    log = {'images': {}, 'scalars': {'loss': loss, 'loss1': loss1,
                                     'loss2': loss2}}

    def train_op():
        # TODO(synk): train_op is a no-op in the original module as well.
        pass

    return loss, log, train_op


def _ref_factor_loss(samples, logdets, factors, rho=RHO):
    """Plain-JAX reference mirroring the PyTorch code, for verification."""
    s1 = samples['example1']
    s2 = samples['example2']
    cat = jnp.concatenate(s1, axis=1)
    nll1 = jnp.mean(0.5 * jnp.sum(cat ** 2, axis=(1, 2, 3)))
    loss1 = nll1 - jnp.mean(logdets['example1'])
    nll2 = 0.0
    for i in range(len(s2)):
        mask = ((factors == i) | ((factors < 0) & (factors != -i))
                ).astype(jnp.float32)[:, None, None, None]
        cond = s2[i] - mask * rho * s1[i]
        n = (0.5 * jnp.sum(cond ** 2, axis=(1, 2, 3))
             / (1.0 - mask[:, 0, 0, 0] * rho ** 2))
        nll2 = nll2 + jnp.mean(n)
    loss2 = nll2 - jnp.mean(logdets['example2'])
    return loss1 + loss2


if __name__ == "__main__":
    key = jax.random.PRNGKey(0)
    B, H, W = 2, 16, 16
    chans = (4, 3)        # different channel counts per factor; C=3 -> D=768
    n_factors = len(chans)  # exercises the zero-padding path (D not mult of 1024)
    keys = jax.random.split(key, 2 * n_factors + 2)

    sample1 = [jax.random.normal(keys[i], (B, chans[i], H, W), jnp.float32)
               for i in range(n_factors)]
    sample2 = [jax.random.normal(keys[n_factors + i], (B, chans[i], H, W),
                                 jnp.float32) for i in range(n_factors)]
    logdet1 = jax.random.normal(keys[-2], (B,), jnp.float32)
    logdet2 = jax.random.normal(keys[-1], (B,), jnp.float32)
    factors = jnp.array([0, -1], dtype=jnp.int32)  # one conditioned, one "free"

    samples = {'example1': sample1, 'example2': sample2}
    logdets = {'example1': logdet1, 'example2': logdet2}

    loss, log, train_op = factor_loss(samples, logdets, factors, global_step=0)
    loss = jax.block_until_ready(loss)

    ref = jax.block_until_ready(_ref_factor_loss(samples, logdets, factors))
    assert jnp.allclose(loss, ref, rtol=1e-5, atol=1e-5), (loss, ref)

    print("KERNEL_OK")
</pallas_src>

<mosaic_0001>
module attributes {stable_mosaic.version = 11 : i64} {
  func.func @_fused_nll_kernel(%arg0: i32, %arg1: i32, %arg2: memref<1x2x8x128xf32, #tpu.memory_space<vmem>>, %arg3: memref<1x2x8x128xf32, #tpu.memory_space<vmem>>, %arg4: memref<1x2x1xf32, #tpu.memory_space<vmem>>, %arg5: memref<1x2x1xf32, #tpu.memory_space<vmem>>, %arg6: memref<1x2x1xf32, #tpu.memory_space<vmem>>, %arg7: memref<1x2x1xf32, #tpu.memory_space<vmem>>, %arg8: memref<2x128xf32, #tpu.memory_space<vmem>>, %arg9: memref<2x128xf32, #tpu.memory_space<vmem>>) attributes {dimension_semantics = [#tpu.dimension_semantics<parallel>, #tpu.dimension_semantics<arbitrary>], iteration_bounds = array<i64: 2, 1>, scalar_prefetch = 0 : i64, scratch_operands = 2 : i64, tpu.core_type = #tpu.core_type<tc>, window_params = [{transform_indices = @transform_0, window_bounds = array<i64: 1, 2, 8, 128>}, {transform_indices = @transform_1, window_bounds = array<i64: 1, 2, 8, 128>}, {transform_indices = @transform_2, window_bounds = array<i64: 1, 2, 1>}, {transform_indices = @transform_3, window_bounds = array<i64: 1, 2, 1>}, {transform_indices = @transform_4, window_bounds = array<i64: 1, 2, 1>}, {transform_indices = @transform_5, window_bounds = array<i64: 1, 2, 1>}]} {
    %c0_i32 = arith.constant 0 : i32
    %0 = arith.cmpi eq, %arg1, %c0_i32 : i32
    %1 = arith.extui %0 : i1 to i32
    %c0_i32_0 = arith.constant 0 : i32
    %2 = arith.cmpi ne, %1, %c0_i32_0 : i32
    scf.if %2 {
      %cst_22 = arith.constant 0.000000e+00 : f32
      %26 = vector.broadcast %cst_22 : f32 to vector<2x128xf32>
      %c0_23 = arith.constant 0 : index
      %c0_24 = arith.constant 0 : index
      %27 = vector.load %arg8[%c0_23, %c0_24] : memref<2x128xf32, #tpu.memory_space<vmem>>, vector<2x128xf32>
      tpu.vector_store %arg8[%c0_23, %c0_24], %26 {strides = array<i32>} : memref<2x128xf32, #tpu.memory_space<vmem>>, vector<2x128xf32>,
      %cst_25 = arith.constant 0.000000e+00 : f32
      %28 = vector.broadcast %cst_25 : f32 to vector<2x128xf32>
      %c0_26 = arith.constant 0 : index
      %c0_27 = arith.constant 0 : index
      %29 = vector.load %arg9[%c0_26, %c0_27] : memref<2x128xf32, #tpu.memory_space<vmem>>, vector<2x128xf32>
      tpu.vector_store %arg9[%c0_26, %c0_27], %28 {strides = array<i32>} : memref<2x128xf32, #tpu.memory_space<vmem>>, vector<2x128xf32>,
    } else {
    }
    %c0 = arith.constant 0 : index
    %c0_1 = arith.constant 0 : index
    %c0_2 = arith.constant 0 : index
    %c0_3 = arith.constant 0 : index
    %3 = vector.load %arg2[%c0, %c0_1, %c0_2, %c0_3] : memref<1x2x8x128xf32, #tpu.memory_space<vmem>>, vector<1x2x8x128xf32>
    %4 = vector.shape_cast %3 : vector<1x2x8x128xf32> to vector<2x8x128xf32>
    %c0_4 = arith.constant 0 : index
    %c0_5 = arith.constant 0 : index
    %c0_6 = arith.constant 0 : index
    %c0_7 = arith.constant 0 : index
    %5 = vector.load %arg3[%c0_4, %c0_5, %c0_6, %c0_7] : memref<1x2x8x128xf32, #tpu.memory_space<vmem>>, vector<1x2x8x128xf32>
    %6 = vector.shape_cast %5 : vector<1x2x8x128xf32> to vector<2x8x128xf32>
    %c0_8 = arith.constant 0 : index
    %c0_9 = arith.constant 0 : index
    %c0_10 = arith.constant 0 : index
    %7 = vector.load %arg4[%c0_8, %c0_9, %c0_10] : memref<1x2x1xf32, #tpu.memory_space<vmem>>, vector<1x2x1xf32>
    %8 = vector.shape_cast %7 : vector<1x2x1xf32> to vector<2x1xf32>
    %9 = vector.shape_cast %8 : vector<2x1xf32> to vector<2x1x1xf32>
    %c0_11 = arith.constant 0 : index
    %c0_12 = arith.constant 0 : index
    %10 = vector.load %arg8[%c0_11, %c0_12] : memref<2x128xf32, #tpu.memory_space<vmem>>, vector<2x128xf32>
    %11 = arith.mulf %4, %4 : vector<2x8x128xf32>
    %cst = arith.constant dense<0.000000e+00> : vector<2x128xf32>
    %12 = vector.multi_reduction <add>, %11, %cst [1] : vector<2x8x128xf32> to vector<2x128xf32>
    %13 = arith.addf %10, %12 : vector<2x128xf32>
    %c0_13 = arith.constant 0 : index
    %c0_14 = arith.constant 0 : index
    %14 = vector.load %arg8[%c0_13, %c0_14] : memref<2x128xf32, #tpu.memory_space<vmem>>, vector<2x128xf32>
    tpu.vector_store %arg8[%c0_13, %c0_14], %13 {strides = array<i32>} : memref<2x128xf32, #tpu.memory_space<vmem>>, vector<2x128xf32>,
    %15 = vector.broadcast %9 : vector<2x1x1xf32> to vector<2x8x128xf32>
    %16 = arith.mulf %15, %4 : vector<2x8x128xf32>
    %17 = arith.subf %6, %16 : vector<2x8x128xf32>
    %c0_15 = arith.constant 0 : index
    %c0_16 = arith.constant 0 : index
    %18 = vector.load %arg9[%c0_15, %c0_16] : memref<2x128xf32, #tpu.memory_space<vmem>>, vector<2x128xf32>
    %19 = arith.mulf %17, %17 : vector<2x8x128xf32>
    %cst_17 = arith.constant dense<0.000000e+00> : vector<2x128xf32>
    %20 = vector.multi_reduction <add>, %19, %cst_17 [1] : vector<2x8x128xf32> to vector<2x128xf32>
    %21 = arith.addf %18, %20 : vector<2x128xf32>
    %c0_18 = arith.constant 0 : index
    %c0_19 = arith.constant 0 : index
    %22 = vector.load %arg9[%c0_18, %c0_19] : memref<2x128xf32, #tpu.memory_space<vmem>>, vector<2x128xf32>
    tpu.vector_store %arg9[%c0_18, %c0_19], %21 {strides = array<i32>} : memref<2x128xf32, #tpu.memory_space<vmem>>, vector<2x128xf32>,
    %c0_i32_20 = arith.constant 0 : i32
    %23 = arith.cmpi eq, %arg1, %c0_i32_20 : i32
    %24 = arith.extui %23 : i1 to i32
    %c0_i32_21 = arith.constant 0 : i32
    %25 = arith.cmpi ne, %24, %c0_i32_21 : i32
    scf.if %25 {
      %c0_22 = arith.constant 0 : index
      %c0_23 = arith.constant 0 : index
      %c0_24 = arith.constant 0 : index
      %26 = vector.load %arg5[%c0_22, %c0_23, %c0_24] : memref<1x2x1xf32, #tpu.memory_space<vmem>>, vector<1x2x1xf32>
      %27 = vector.shape_cast %26 : vector<1x2x1xf32> to vector<2x1xf32>
      %c0_25 = arith.constant 0 : index
      %c0_26 = arith.constant 0 : index
      %28 = vector.load %arg8[%c0_25, %c0_26] : memref<2x128xf32, #tpu.memory_space<vmem>>, vector<2x128xf32>
      %cst_27 = arith.constant dense<0.000000e+00> : vector<2xf32>
      %29 = vector.multi_reduction <add>, %28, %cst_27 [1] : vector<2x128xf32> to vector<2xf32>
      %30 = vector.shape_cast %29 : vector<2xf32> to vector<2x1xf32>
      %cst_28 = arith.constant 5.000000e-01 : f32
      %31 = vector.broadcast %cst_28 : f32 to vector<2x1xf32>
      %32 = arith.mulf %31, %30 : vector<2x1xf32>
      %c0_29 = arith.constant 0 : index
      %c0_30 = arith.constant 0 : index
      %c0_31 = arith.constant 0 : index
      %33 = vector.load %arg6[%c0_29, %c0_30, %c0_31] : memref<1x2x1xf32, #tpu.memory_space<vmem>>, vector<1x2x1xf32>
      %34 = vector.shape_cast %33 : vector<1x2x1xf32> to vector<2x1xf32>
      %35 = vector.shape_cast %32 : vector<2x1xf32> to vector<1x2x1xf32>
      tpu.vector_store %arg6[%c0_29, %c0_30, %c0_31], %35 {strides = array<i32>} : memref<1x2x1xf32, #tpu.memory_space<vmem>>, vector<1x2x1xf32>,
      %c0_32 = arith.constant 0 : index
      %c0_33 = arith.constant 0 : index
      %36 = vector.load %arg9[%c0_32, %c0_33] : memref<2x128xf32, #tpu.memory_space<vmem>>, vector<2x128xf32>
      %cst_34 = arith.constant dense<0.000000e+00> : vector<2xf32>
      %37 = vector.multi_reduction <add>, %36, %cst_34 [1] : vector<2x128xf32> to vector<2xf32>
      %38 = vector.shape_cast %37 : vector<2xf32> to vector<2x1xf32>
      %cst_35 = arith.constant 5.000000e-01 : f32
      %39 = vector.broadcast %cst_35 : f32 to vector<2x1xf32>
      %40 = arith.mulf %39, %38 : vector<2x1xf32>
      %41 = arith.mulf %40, %27 : vector<2x1xf32>
      %c0_36 = arith.constant 0 : index
      %c0_37 = arith.constant 0 : index
      %c0_38 = arith.constant 0 : index
      %42 = vector.load %arg7[%c0_36, %c0_37, %c0_38] : memref<1x2x1xf32, #tpu.memory_space<vmem>>, vector<1x2x1xf32>
      %43 = vector.shape_cast %42 : vector<1x2x1xf32> to vector<2x1xf32>
      %44 = vector.shape_cast %41 : vector<2x1xf32> to vector<1x2x1xf32>
      tpu.vector_store %arg7[%c0_36, %c0_37, %c0_38], %44 {strides = array<i32>} : memref<1x2x1xf32, #tpu.memory_space<vmem>>, vector<1x2x1xf32>,
    } else {
    }
    return
  }
  func.func @transform_0(%arg0: i32, %arg1: i32) -> (i32, i32, i32, i32) {
    %c0_i32 = arith.constant 0 : i32
    %c0_i32_0 = arith.constant 0 : i32
    %c0_i32_1 = arith.constant 0 : i32
    return %arg0, %c0_i32, %arg1, %c0_i32_0 : i32, i32, i32, i32
  }
  func.func @transform_1(%arg0: i32, %arg1: i32) -> (i32, i32, i32, i32) {
    %c0_i32 = arith.constant 0 : i32
    %c0_i32_0 = arith.constant 0 : i32
    %c0_i32_1 = arith.constant 0 : i32
    return %arg0, %c0_i32, %arg1, %c0_i32_0 : i32, i32, i32, i32
  }
  func.func @transform_2(%arg0: i32, %arg1: i32) -> (i32, i32, i32) {
    %c0_i32 = arith.constant 0 : i32
    %c0_i32_0 = arith.constant 0 : i32
    %c0_i32_1 = arith.constant 0 : i32
    return %arg0, %c0_i32, %c0_i32_0 : i32, i32, i32
  }
  func.func @transform_3(%arg0: i32, %arg1: i32) -> (i32, i32, i32) {
    %c0_i32 = arith.constant 0 : i32
    %c0_i32_0 = arith.constant 0 : i32
    %c0_i32_1 = arith.constant 0 : i32
    return %arg0, %c0_i32, %c0_i32_0 : i32, i32, i32
  }
  func.func @transform_4(%arg0: i32, %arg1: i32) -> (i32, i32, i32) {
    %c0_i32 = arith.constant 0 : i32
    %c0_i32_0 = arith.constant 0 : i32
    %c0_i32_1 = arith.constant 0 : i32
    return %arg0, %c0_i32, %c0_i32_0 : i32, i32, i32
  }
  func.func @transform_5(%arg0: i32, %arg1: i32) -> (i32, i32, i32) {
    %c0_i32 = arith.constant 0 : i32
    %c0_i32_0 = arith.constant 0 : i32
    %c0_i32_1 = arith.constant 0 : i32
    return %arg0, %c0_i32, %c0_i32_0 : i32, i32, i32
  }
}

</mosaic_0001>

<llo_original>
// kernel: tpu_custom_call.1
$region0: #{tpu_custom_call.1}
  #allocation0 [shape = 'u32[]', space=smem, size = 0x4, offset = 0x4, fixed_abs, tag = 'smem constant byte address 0x4 - core index']
  #allocation1 [shape = 'u32[144,128]{1,0:T(1,128)}', space=vmem, size = 0x12000, scoped, tag = 'internal scratch']
  #allocation2 [shape = 'f32[2,128]{1,0:T(2,128)}', space=vmem, size = 0x400, scoped, tag = 'scratch operand']
  #allocation3 [shape = 'f32[2,128]{1,0:T(2,128)}', space=vmem, size = 0x400, scoped, tag = 'scratch operand']
  %s0 = inlined_call_operand.hbm [shape: f32[2,2,8,128], index: 0, kind: input, shape index: {}]
  %s1 = inlined_call_operand.hbm [shape: f32[2,2,8,128], index: 1, kind: input, shape index: {}]
  %s2 = inlined_call_operand.vmem [shape: f32[2,2,1], index: 2, kind: input, shape index: {}]
  %s3 = inlined_call_operand.vmem [shape: f32[2,2,1], index: 3, kind: input, shape index: {}]
  %s4 = inlined_call_operand.vmem [shape: f32[2,2,1], index: 4, kind: output, shape index: {0}]
  %s5 = inlined_call_operand.vmem [shape: f32[2,2,1], index: 5, kind: output, shape index: {1}]
  %6 = xla_tuple %s4, %s5
  %s7 = sld [smem:[#allocation0]]
  $region73: #{tpu_custom_call.1} parent=0
    _
  %s9 = ssub.s32 1, %s7
  %s10 = scalar_select 0, %s9, %s7
  $region1: #{tpu_custom_call.1} parent=0
    #allocation4 [shape = 'u8[16384]{0}', space=vmem, size = 0x4000, scoped, tag = 'input window, operand 0']
    #allocation5 [shape = 's32[2]{0}', space=sflag, size = 0x8, scoped, tag = 'scoped memory for tpu_custom_call.1']
    #allocation6 [shape = 'u8[16384]{0}', space=vmem, size = 0x4000, scoped, tag = 'input window, operand 1']
    #allocation7 [shape = 's32[2]{0}', space=sflag, size = 0x8, scoped, tag = 'scoped memory for tpu_custom_call.1']
    %11 = vsyncpa [#allocation5], 0
    %s12 = scalar_lea.sflag [#allocation5], 1
    %13 = vsyncpa %s12, 0
    %14 = vsyncpa [#allocation7], 0
    %s15 = scalar_lea.sflag [#allocation7], 1
    %16 = vsyncpa %s15, 0
    loop: start=0, step=1, limit=4
    $region2: #{tpu_custom_call.1} parent=1 // loop_pre_header
      _
    $region3: #{tpu_custom_call.1} parent=1 // loop_header
      %s18 = sphi 0, %s22
      %p19 = scmp.ge.s32.totalorder %s18, 4
      %s25 = sphi 0, %s37
      %s26 = sphi 0, %s33
      %s27 = sphi 0, %s25
      %s28 = sphi 0, %s26
      %s29 = sphi 0, %s27
      %s30 = sphi 0, %s28
      %s42 = sphi 0, %s44
      %s45 = sphi 0, %s42
      %s46 = sphi 0, %s45
      %s62 = sphi 0, %s46
      %s70 = sphi 0, %s72
      %s73 = sphi 0, %s70
      %s74 = sphi 0, %s73
      %s90 = sphi 0, %s74
      %s96 = sphi 0, %s98
      %s99 = sphi 0, %s96
      %s100 = sphi 0, %s99
      %s116 = sphi 0, %s100
      %s122 = sphi 0, %s124
      %s125 = sphi 0, %s122
      %s126 = sphi 0, %s125
      %s142 = sphi 0, %s126
      %s148 = sphi 0, %s150
      %s151 = sphi 0, %s148
      %s152 = sphi 0, %s151
      %s168 = sphi 0, %s152
      %s174 = sphi 0, %s176
      %s177 = sphi 0, %s174
      %s178 = sphi 0, %s177
      %s194 = sphi 0, %s178
    $region4: #{tpu_custom_call.1} parent=1 // loop_header_branch
      %21 = sbr.rel (%p19) target = $region8
    $region5: #{tpu_custom_call.1} parent=1 // loop_body
      %s23 = ssub.s32 %s18, 1
      %s24 = ssub.s32 %s18, 2
      %s31 = sadd.s32 1, %s26
      %p32 = scmp.ge.s32.totalorder %s31, 1
      %s33 = scalar_select %p32, 0, %s31
      %s34 = sadd.s32 1, %s25
      %s35 = scalar_select %p32, %s34, %s25
      %p36 = scmp.ge.s32.totalorder %s35, 2
      %s37 = scalar_select %p36, 0, %s35
      %s38 = ssub.s32 %s25, %s37
      %s39 = ssub.s32 %s26, %s33
      %s40 = sor.u32 %s38, %s39
      %p41 = scmp.eq.s32.totalorder %s40, 0
      %s43 = sadd.s32 %s42, 1
      %s44 = scalar_select %p41, %s42, %s43
      %p47 = pneg %p41
      %p48 = scmp.eq.s32.totalorder %s18, 1
      %p49 = por %p47, %p48
      %p50 = scmp.ne.s32.totalorder %s42, %s45
      %p51 = scmp.eq.s32.totalorder %s18, 0
      %p52 = por %p50, %p51
      %p53 = scmp.ne.s32.totalorder %s42, %s45
      %p54 = scmp.eq.s32.totalorder %s23, 1
      %p55 = por %p53, %p54
      %p56 = scmp.ne.s32.totalorder %s45, %s46
      %p57 = scmp.eq.s32.totalorder %s23, 0
      %p58 = por %p56, %p57
      %p59 = scmp.ne.s32.totalorder %s45, %s46
      %p60 = scmp.eq.s32.totalorder %s24, 1
      %p61 = por %p59, %p60
      %p63 = scmp.ne.s32.totalorder %s46, %s62
      %p64 = scmp.eq.s32.totalorder %s24, 0
      %p65 = por %p63, %p64
      %s66 = ssub.s32 %s25, %s37
      %s67 = ssub.s32 %s26, %s33
      %s68 = sor.u32 %s66, %s67
      %p69 = scmp.eq.s32.totalorder %s68, 0
      %s71 = sadd.s32 %s70, 1
      %s72 = scalar_select %p69, %s70, %s71
      %p75 = pneg %p69
      %p76 = scmp.eq.s32.totalorder %s18, 1
      %p77 = por %p75, %p76
      %p78 = scmp.ne.s32.totalorder %s70, %s73
      %p79 = scmp.eq.s32.totalorder %s18, 0
      %p80 = por %p78, %p79
      %p81 = scmp.ne.s32.totalorder %s70, %s73
      %p82 = scmp.eq.s32.totalorder %s23, 1
      %p83 = por %p81, %p82
      %p84 = scmp.ne.s32.totalorder %s73, %s74
      %p85 = scmp.eq.s32.totalorder %s23, 0
      %p86 = por %p84, %p85
      %p87 = scmp.ne.s32.totalorder %s73, %s74
      %p88 = scmp.eq.s32.totalorder %s24, 1
      %p89 = por %p87, %p88
      %p91 = scmp.ne.s32.totalorder %s74, %s90
      %p92 = scmp.eq.s32.totalorder %s24, 0
      %p93 = por %p91, %p92
      %s94 = ssub.s32 %s25, %s37
      %p95 = scmp.eq.s32.totalorder %s94, 0
      %s97 = sadd.s32 %s96, 1
      %s98 = scalar_select %p95, %s96, %s97
      %p101 = pneg %p95
      %p102 = scmp.eq.s32.totalorder %s18, 1
      %p103 = por %p101, %p102
      %p104 = scmp.ne.s32.totalorder %s96, %s99
      %p105 = scmp.eq.s32.totalorder %s18, 0
      %p106 = por %p104, %p105
      %p107 = scmp.ne.s32.totalorder %s96, %s99
      %p108 = scmp.eq.s32.totalorder %s23, 1
      %p109 = por %p107, %p108
      %p110 = scmp.ne.s32.totalorder %s99, %s100
      %p111 = scmp.eq.s32.totalorder %s23, 0
      %p112 = por %p110, %p111
      %p113 = scmp.ne.s32.totalorder %s99, %s100
      %p114 = scmp.eq.s32.totalorder %s24, 1
      %p115 = por %p113, %p114
      %p117 = scmp.ne.s32.totalorder %s100, %s116
      %p118 = scmp.eq.s32.totalorder %s24, 0
      %p119 = por %p117, %p118
      %s120 = ssub.s32 %s25, %s37
      %p121 = scmp.eq.s32.totalorder %s120, 0
      %s123 = sadd.s32 %s122, 1
      %s124 = scalar_select %p121, %s122, %s123
      %p127 = pneg %p121
      %p128 = scmp.eq.s32.totalorder %s18, 1
      %p129 = por %p127, %p128
      %p130 = scmp.ne.s32.totalorder %s122, %s125
      %p131 = scmp.eq.s32.totalorder %s18, 0
      %p132 = por %p130, %p131
      %p133 = scmp.ne.s32.totalorder %s122, %s125
      %p134 = scmp.eq.s32.totalorder %s23, 1
      %p135 = por %p133, %p134
      %p136 = scmp.ne.s32.totalorder %s125, %s126
      %p137 = scmp.eq.s32.totalorder %s23, 0
      %p138 = por %p136, %p137
      %p139 = scmp.ne.s32.totalorder %s125, %s126
      %p140 = scmp.eq.s32.totalorder %s24, 1
      %p141 = por %p139, %p140
      %p143 = scmp.ne.s32.totalorder %s126, %s142
      %p144 = scmp.eq.s32.totalorder %s24, 0
      %p145 = por %p143, %p144
      %s146 = ssub.s32 %s25, %s37
      %p147 = scmp.eq.s32.totalorder %s146, 0
      %s149 = sadd.s32 %s148, 1
      %s150 = scalar_select %p147, %s148, %s149
      %p153 = pneg %p147
      %p154 = scmp.eq.s32.totalorder %s18, 1
      %p155 = por %p153, %p154
      %p156 = scmp.ne.s32.totalorder %s148, %s151
      %p157 = scmp.eq.s32.totalorder %s18, 0
      %p158 = por %p156, %p157
      %p159 = scmp.ne.s32.totalorder %s148, %s151
      %p160 = scmp.eq.s32.totalorder %s23, 1
      %p161 = por %p159, %p160
      %p162 = scmp.ne.s32.totalorder %s151, %s152
      %p163 = scmp.eq.s32.totalorder %s23, 0
      %p164 = por %p162, %p163
      %p165 = scmp.ne.s32.totalorder %s151, %s152
      %p166 = scmp.eq.s32.totalorder %s24, 1
      %p167 = por %p165, %p166
      %p169 = scmp.ne.s32.totalorder %s152, %s168
      %p170 = scmp.eq.s32.totalorder %s24, 0
      %p171 = por %p169, %p170
      %s172 = ssub.s32 %s25, %s37
      %p173 = scmp.eq.s32.totalorder %s172, 0
      %s175 = sadd.s32 %s174, 1
      %s176 = scalar_select %p173, %s174, %s175
      %p179 = pneg %p173
      %p180 = scmp.eq.s32.totalorder %s18, 1
      %p181 = por %p179, %p180
      %p182 = scmp.ne.s32.totalorder %s174, %s177
      %p183 = scmp.eq.s32.totalorder %s18, 0
      %p184 = por %p182, %p183
      %p185 = scmp.ne.s32.totalorder %s174, %s177
      %p186 = scmp.eq.s32.totalorder %s23, 1
      %p187 = por %p185, %p186
      %p188 = scmp.ne.s32.totalorder %s177, %s178
      %p189 = scmp.eq.s32.totalorder %s23, 0
      %p190 = por %p188, %p189
      %p191 = scmp.ne.s32.totalorder %s177, %s178
      %p192 = scmp.eq.s32.totalorder %s24, 1
      %p193 = por %p191, %p192
      %p195 = scmp.ne.s32.totalorder %s178, %s194
      %p196 = scmp.eq.s32.totalorder %s24, 0
      %p197 = por %p195, %p196
      %p198 = scmp.le.s32.totalorder 1, %s18
      %p199 = scmp.lt.s32.totalorder %s18, 3
      %p200 = pnand %p198, %p199
      %p201 = pneg %p200
      // Predicated region
      $region9: #{tpu_custom_call.1} parent=5 // pred_check
        _
      $region10: #{tpu_custom_call.1} parent=5 // pred_check_branch
        %203 = sbr.rel (%p200) target = $region12
      $region11: #{tpu_custom_call.1} parent=5 // pred_region
        %s204 = ssub.s32 %s18, 1
      $region12: #{tpu_custom_call.1} parent=5 // pred_fallthru
        _
      %p205 = scmp.lt.s32.totalorder %s18, 2
      // Predicated region
      $region13: #{tpu_custom_call.1} parent=5 // pred_check
        %p206 = pneg %p205
      $region14: #{tpu_custom_call.1} parent=5 // pred_check_branch
        %208 = sbr.rel (%p206) target = $region16
      $region15: #{tpu_custom_call.1} parent=5 // pred_region
        // Predicated region
        $region17: #{tpu_custom_call.1} parent=15 // pred_check
          %p209 = pneg %p52
        $region18: #{tpu_custom_call.1} parent=15 // pred_check_branch
          %211 = sbr.rel (%p209) target = $region20
        $region19: #{tpu_custom_call.1} parent=15 // pred_region
          %s212 = sand.u32 %s42, 1
          %s213 = scalar_lea.sflag [#allocation5], %s212
          %s214 = sand.u32 %s42, 1
          %s215 = smul.addr %s214, 16
          %s216 = scalar_lea.vmem [#allocation4], %s215
          %s218 = ssub.s32 256, 256
          %219 = vsyncadd %s213, %s218
          %s220 = smul.addr %s25, 2
          %s221 = sadd.s32 %s26, %s220
          %s222 = smul.addr %s221, 128
          %s223 = scalar_lea.hbm %s0, %s222
          %s224 = sshll.u32 %s216, 4
          %s225 = int_to_ptr.vmem [resolvable:$true] %s224
          %230 = dma.hbm_to_vmem [thread:$0]  %s223, 256, %s225, %s213, 128, 128, 8
        $region20: #{tpu_custom_call.1} parent=15 // pred_fallthru
          _
        // Predicated region
        $region21: #{tpu_custom_call.1} parent=15 // pred_check
          %p231 = pneg %p80
        $region22: #{tpu_custom_call.1} parent=15 // pred_check_branch
          %233 = sbr.rel (%p231) target = $region24
        $region23: #{tpu_custom_call.1} parent=15 // pred_region
          %s234 = sand.u32 %s70, 1
          %s235 = scalar_lea.sflag [#allocation7], %s234
          %s236 = sand.u32 %s70, 1
          %s237 = smul.addr %s236, 16
          %s238 = scalar_lea.vmem [#allocation6], %s237
          %s240 = ssub.s32 256, 256
          %241 = vsyncadd %s235, %s240
          %s242 = smul.addr %s25, 2
          %s243 = sadd.s32 %s26, %s242
          %s244 = smul.addr %s243, 128
          %s245 = scalar_lea.hbm %s1, %s244
          %s246 = sshll.u32 %s238, 4
          %s247 = int_to_ptr.vmem [resolvable:$true] %s246
          %252 = dma.hbm_to_vmem [thread:$0]  %s245, 256, %s247, %s235, 128, 128, 8
        $region24: #{tpu_custom_call.1} parent=15 // pred_fallthru
          _
        // Predicated region
        $region25: #{tpu_custom_call.1} parent=15 // pred_check
          %p253 = pneg %p106
        $region26: #{tpu_custom_call.1} parent=15 // pred_check_branch
          %255 = sbr.rel (%p253) target = $region28
        $region27: #{tpu_custom_call.1} parent=15 // pred_region
          %p256 = scmp.lt.s32.totalorder %s25, 1
          %s257 = scalar_select %p256, %s25, 1
          %s258 = smul.addr %s257, 2
          %s259 = scalar_lea.vmem %s2, %s258
        $region28: #{tpu_custom_call.1} parent=15 // pred_fallthru
          _
        // Predicated region
        $region29: #{tpu_custom_call.1} parent=15 // pred_check
          %p260 = pneg %p132
        $region30: #{tpu_custom_call.1} parent=15 // pred_check_branch
          %262 = sbr.rel (%p260) target = $region32
        $region31: #{tpu_custom_call.1} parent=15 // pred_region
          %p263 = scmp.lt.s32.totalorder %s25, 1
          %s264 = scalar_select %p263, %s25, 1
          %s265 = smul.addr %s264, 2
          %s266 = scalar_lea.vmem %s3, %s265
        $region32: #{tpu_custom_call.1} parent=15 // pred_fallthru
          _
      $region16: #{tpu_custom_call.1} parent=5 // pred_fallthru
        _
      %p267 = scmp.le.s32.totalorder 1, %s18
      %p268 = scmp.lt.s32.totalorder %s18, 3
      %p269 = pnand %p267, %p268
      %p270 = pneg %p269
      // Predicated region
      $region33: #{tpu_custom_call.1} parent=5 // pred_check
        _
      $region34: #{tpu_custom_call.1} parent=5 // pred_check_branch
        %272 = sbr.rel (%p269) target = $region36
      $region35: #{tpu_custom_call.1} parent=5 // pred_region
        %s273 = ssub.s32 %s18, 1
        %s274 = sand.u32 %s45, 1
        %s275 = scalar_lea.sflag [#allocation5], %s274
        %s276 = sand.u32 %s45, 1
        %s277 = smul.addr %s276, 16
        %s278 = scalar_lea.vmem [#allocation4], %s277
        // Predicated region
        $region37: #{tpu_custom_call.1} parent=35 // pred_check
          %p279 = pneg %p58
        $region38: #{tpu_custom_call.1} parent=35 // pred_check_branch
          %281 = sbr.rel (%p279) target = $region40
        $region39: #{tpu_custom_call.1} parent=35 // pred_region
          %282 = dma.done %s275, 256
        $region40: #{tpu_custom_call.1} parent=35 // pred_fallthru
          _
        %s283 = sand.u32 %s73, 1
        %s284 = scalar_lea.sflag [#allocation7], %s283
        %s285 = sand.u32 %s73, 1
        %s286 = smul.addr %s285, 16
        %s287 = scalar_lea.vmem [#allocation6], %s286
        // Predicated region
        $region41: #{tpu_custom_call.1} parent=35 // pred_check
          %p288 = pneg %p86
        $region42: #{tpu_custom_call.1} parent=35 // pred_check_branch
          %290 = sbr.rel (%p288) target = $region44
        $region43: #{tpu_custom_call.1} parent=35 // pred_region
          %291 = dma.done %s284, 256
        $region44: #{tpu_custom_call.1} parent=35 // pred_fallthru
          _
        %s292 = sand.u32 %s45, 1
        %s293 = scalar_lea.sflag [#allocation5], %s292
        %s294 = sand.u32 %s45, 1
        %s295 = smul.addr %s294, 16
        %s296 = scalar_lea.vmem [#allocation4], %s295
        %p297 = pneg %p58
        %p298 = pneg %p55
        %s299 = sand.u32 %s73, 1
        %s300 = scalar_lea.sflag [#allocation7], %s299
        %s301 = sand.u32 %s73, 1
        %s302 = smul.addr %s301, 16
        %s303 = scalar_lea.vmem [#allocation6], %s302
        %p304 = pneg %p86
        %p305 = pneg %p83
        %p306 = scmp.lt.s32.totalorder %s27, 1
        %s307 = scalar_select %p306, %s27, 1
        %s308 = smul.addr %s307, 2
        %s309 = scalar_lea.vmem %s2, %s308
        %p310 = pneg %p112
        %p311 = pneg %p109
        %p312 = scmp.lt.s32.totalorder %s27, 1
        %s313 = scalar_select %p312, %s27, 1
        %s314 = smul.addr %s313, 2
        %s315 = scalar_lea.vmem %s3, %s314
        %p316 = pneg %p138
        %p317 = pneg %p135
        %p318 = pneg %p164
        %p319 = pneg %p161
        %p320 = scmp.lt.s32.totalorder %s27, 1
        %s321 = scalar_select %p320, %s27, 1
        %s322 = smul.addr %s321, 2
        %s323 = scalar_lea.vmem %s4, %s322
        %p324 = pneg %p190
        %p325 = pneg %p187
        %p326 = scmp.lt.s32.totalorder %s27, 1
        %s327 = scalar_select %p326, %s27, 1
        %s328 = smul.addr %s327, 2
        %s329 = scalar_lea.vmem %s5, %s328
        %p330 = scmp.lt.s32.totalorder %s27, 1
        %s331 = scalar_select %p330, %s27, 1
        %s332 = smul.addr %s331, 2
        %s333 = scalar_lea.vmem %s2, %s332
        %p334 = scmp.lt.s32.totalorder %s27, 1
        %s335 = scalar_select %p334, %s27, 1
        %s336 = smul.addr %s335, 2
        %s337 = scalar_lea.vmem %s3, %s336
        %p338 = scmp.lt.s32.totalorder %s27, 1
        %s339 = scalar_select %p338, %s27, 1
        %s340 = smul.addr %s339, 2
        %s341 = scalar_lea.vmem %s4, %s340
        %p342 = scmp.lt.s32.totalorder %s27, 1
        %s343 = scalar_select %p342, %s27, 1
        %s344 = smul.addr %s343, 2
        %s345 = scalar_lea.vmem %s5, %s344
        %p346 = scmp.eq.s32.totalorder %s28, 0
        // Predicated region
        $region45: #{tpu_custom_call.1} parent=35 // pred_check
          %p347 = pneg %p346
        $region46: #{tpu_custom_call.1} parent=35 // pred_check_branch
          %349 = sbr.rel (%p347) target = $region48
        $region47: #{tpu_custom_call.1} parent=35 // pred_region
          %350 = vst [vmem:[#allocation2] sm:$0x3] 0.0
          %351 = vst [vmem:[#allocation3] sm:$0x3] 0.0
        $region48: #{tpu_custom_call.1} parent=35 // pred_fallthru
          _
        %v352 = vld [vmem:[%s278] sm:$0xff]
        %v353 = vld [vmem:[%s278 + $0x8] sm:$0xff]
        %v354 = vld [vmem:[%s287] sm:$0xff]
        %v355 = vld [vmem:[%s287 + $0x8] sm:$0xff]
        %v356 = vld [vmem:[%s333] sm:$0x3]
        %v359 = vunpack.c.l.s4 1966171168
        %v360 = vunpack.c.0.s8 %v359
        %v361 = vlaneseq
        %v362 = vshrl.u32 %v361, 7
        %v363 = vsub.s32 %v360, %v362
        %v364 = vrot.slane %v356, %v363
        %v365 = vcombine.high %v364, %v364
        %v367 = vunpack.c.l.s4 1966171168
        %v368 = vunpack.c.0.s8 %v367
        %v369 = vlaneseq
        %v370 = vshrl.u32 %v369, 7
        %v371 = vsub.s32 %v368, %v370
        %v372 = vrot.slane %v364, %v371
        %v374 = vunpack.c.l.s4 1966171168
        %v375 = vunpack.c.0.s8 %v374
        %v376 = vlaneseq
        %v377 = vshrl.u32 %v376, 7
        %v378 = vsub.s32 %v375, %v377
        %v379 = vrot.slane %v365, %v378
        %v380 = vld [vmem:[#allocation2] sm:$0x3]
        %v381 = vmul.f32 %v352, %v352
        %v382 = vmul.f32 %v353, %v353
        %v383 = vrot.slane %v381, 4
        %v384 = vadd.f32 %v381, %v383
        %v385 = vrot.slane %v384, 2
        %v386 = vadd.f32 %v384, %v385
        %v387 = vrot.slane %v386, 1
        %v388 = vadd.f32 %v386, %v387
        %v389 = vrot.slane %v382, 4
        %v390 = vadd.f32 %v382, %v389
        %v391 = vrot.slane %v390, 2
        %v392 = vadd.f32 %v390, %v391
        %v393 = vrot.slane %v392, 1
        %v394 = vadd.f32 %v392, %v393
        %vm397 = vcmask 1041409
        %v398 = vsel %vm397, %v394, %v388
        %v400 = vadd.f32 %v380, %v398
        %401 = vst [vmem:[#allocation2] sm:$0x3] %v400
        %v402 = vlaneseq
        %v403 = vshrl.u32 %v402, 7
        %v404 = vsub.s32 0, %v403
        %v405 = vrot.slane %v372, %v404
        %v406 = vlaneseq
        %v407 = vshrl.u32 %v406, 7
        %v408 = vsub.s32 0, %v407
        %v409 = vrot.slane %v379, %v408
        %410 = vset.pattern.permute.xlu0 0
        %411 = vperm.xlu0 %410, %v405
        %v412 = vpop.permute.xlu0 %411
        %414 = vset.pattern.permute.xlu0 0
        %415 = vperm.xlu0 %414, %v409
        %v416 = vpop.permute.xlu0 %415
        %v418 = vmul.f32 %v412, %v352
        %v419 = vmul.f32 %v416, %v353
        %v420 = vsub.f32 %v354, %v418
        %v421 = vsub.f32 %v355, %v419
        %v422 = vld [vmem:[#allocation3] sm:$0x3]
        %v423 = vmul.f32 %v420, %v420
        %v424 = vmul.f32 %v421, %v421
        %v425 = vrot.slane %v423, 4
        %v426 = vadd.f32 %v423, %v425
        %v427 = vrot.slane %v426, 2
        %v428 = vadd.f32 %v426, %v427
        %v429 = vrot.slane %v428, 1
        %v430 = vadd.f32 %v428, %v429
        %v431 = vrot.slane %v424, 4
        %v432 = vadd.f32 %v424, %v431
        %v433 = vrot.slane %v432, 2
        %v434 = vadd.f32 %v432, %v433
        %v435 = vrot.slane %v434, 1
        %v436 = vadd.f32 %v434, %v435
        %v439 = vsel %vm397, %v436, %v430
        %v441 = vadd.f32 %v422, %v439
        %442 = vst [vmem:[#allocation3] sm:$0x3] %v441
        // Predicated region
        $region49: #{tpu_custom_call.1} parent=35 // pred_check
          %p443 = pneg %p346
        $region50: #{tpu_custom_call.1} parent=35 // pred_check_branch
          %445 = sbr.rel (%p443) target = $region52
        $region51: #{tpu_custom_call.1} parent=35 // pred_region
          %v446 = vld [vmem:[%s337] sm:$0x3]
          %v447 = vld [vmem:[#allocation2] sm:$0x3]
          %vm448 = vcmask 1041408
          %v449 = vsel %vm448, %v447, 0.0
          %450 = vadd.xlane.f32.xlu0 %v449
          %v451 = vpop.xlane.xlu0 %450
          %v452 = vmul.f32 %v451, 0.5
          %vm453 = vcmask 1024
          %454 = vst.msk [vmem:[%s341] sm:$0x3] %vm453, %v452
          %v455 = vld [vmem:[#allocation3] sm:$0x3]
          %v456 = vsel %vm448, %v455, 0.0
          %457 = vadd.xlane.f32.xlu0 %v456
          %v458 = vpop.xlane.xlu0 %457
          %v459 = vmul.f32 %v458, 0.5
          %v460 = vmul.f32 %v459, %v446
          %461 = vst.msk [vmem:[%s345] sm:$0x3] %vm453, %v460
        $region52: #{tpu_custom_call.1} parent=35 // pred_fallthru
          _
        %p462 = scmp.lt.s32.totalorder %s27, 1
        %s463 = scalar_select %p462, %s27, 1
        %s464 = smul.addr %s463, 2
        %s465 = scalar_lea.vmem %s4, %s464
        %p466 = scmp.lt.s32.totalorder %s27, 1
        %s467 = scalar_select %p466, %s27, 1
        %s468 = smul.addr %s467, 2
        %s469 = scalar_lea.vmem %s5, %s468
        // Predicated region
        $region53: #{tpu_custom_call.1} parent=35 // pred_check
          %p470 = pneg %p161
        $region54: #{tpu_custom_call.1} parent=35 // pred_check_branch
          %472 = sbr.rel (%p470) target = $region56
        $region55: #{tpu_custom_call.1} parent=35 // pred_region
          _
        $region56: #{tpu_custom_call.1} parent=35 // pred_fallthru
          _
        // Predicated region
        $region57: #{tpu_custom_call.1} parent=35 // pred_check
          %p473 = pneg %p187
        $region58: #{tpu_custom_call.1} parent=35 // pred_check_branch
          %475 = sbr.rel (%p473) target = $region60
        $region59: #{tpu_custom_call.1} parent=35 // pred_region
          _
        $region60: #{tpu_custom_call.1} parent=35 // pred_fallthru
          _
      $region36: #{tpu_custom_call.1} parent=5 // pred_fallthru
        _
      %p476 = scmp.le.s32.totalorder 2, %s18
      // Predicated region
      $region61: #{tpu_custom_call.1} parent=5 // pred_check
        %p477 = pneg %p476
      $region62: #{tpu_custom_call.1} parent=5 // pred_check_branch
        %479 = sbr.rel (%p477) target = $region64
      $region63: #{tpu_custom_call.1} parent=5 // pred_region
        %s480 = ssub.s32 %s18, 2
        // Predicated region
        $region65: #{tpu_custom_call.1} parent=63 // pred_check
          %p481 = pneg %p167
        $region66: #{tpu_custom_call.1} parent=63 // pred_check_branch
          %483 = sbr.rel (%p481) target = $region68
        $region67: #{tpu_custom_call.1} parent=63 // pred_region
          %p484 = scmp.lt.s32.totalorder %s29, 1
          %s485 = scalar_select %p484, %s29, 1
          %s486 = smul.addr %s485, 2
          %s487 = scalar_lea.vmem %s4, %s486
        $region68: #{tpu_custom_call.1} parent=63 // pred_fallthru
          _
        // Predicated region
        $region69: #{tpu_custom_call.1} parent=63 // pred_check
          %p488 = pneg %p193
        $region70: #{tpu_custom_call.1} parent=63 // pred_check_branch
          %490 = sbr.rel (%p488) target = $region72
        $region71: #{tpu_custom_call.1} parent=63 // pred_region
          %p491 = scmp.lt.s32.totalorder %s29, 1
          %s492 = scalar_select %p491, %s29, 1
          %s493 = smul.addr %s492, 2
          %s494 = scalar_lea.vmem %s5, %s493
        $region72: #{tpu_custom_call.1} parent=63 // pred_fallthru
          _
      $region64: #{tpu_custom_call.1} parent=5 // pred_fallthru
        _
    $region6: #{tpu_custom_call.1} parent=1 // loop_footer
      %s22 = sadd.s32 1, %s18
    $region7: #{tpu_custom_call.1} parent=1 // loop_footer_branch
      %17 = sbr.rel target = $region3
    $region8: #{tpu_custom_call.1} parent=1 // loop_exit
      _
    %495 = vsyncpa [#allocation5], 1
    %s496 = scalar_lea.sflag [#allocation5], 1
    %497 = vsyncpa %s496, 1
    %498 = vsyncpa [#allocation7], 1
    %s499 = scalar_lea.sflag [#allocation7], 1
    %500 = vsyncpa %s499, 1

</llo_original>
